<compile_context>
chip_gen: v7x
topology: tpu7x:2x2x1
jax: 0.10.0
libtpu: 0.0.40
codegen_flags: <defaults>
</compile_context>

<pallas_src>
import functools

import jax
import jax.numpy as jnp
from jax import lax
from jax.experimental import pallas as pl
from jax.experimental.pallas import tpu as pltpu


_MASK_VALUE = -0.7 * float(jnp.finfo(jnp.float32).max)
_VMEM_LIMIT = 48 * 1024 * 1024   # fits v7x's 64 MiB physical VMEM


def _pick_tile(size, preferred):
    for t in preferred:
        if size % t == 0:
            return t
    return size


# -----------------------------------------------------------------------------
# 1) Projection kernel: y = x @ WqT + b  -- run ONCE per input stream.
#    Weight arrives already cast to the MXU compute dtype (bf16); activations
#    are cast in-kernel; accumulation and the bias-add are f32.
# -----------------------------------------------------------------------------
def _linear_kernel(x_ref, wqt_ref, b_ref, o_ref, *, compute_dtype):
    x = x_ref[0].astype(compute_dtype)                               # (ts, Ep)
    y = jnp.dot(x, wqt_ref[...], preferred_element_type=jnp.float32)
    y = y + b_ref[...]                                               # f32 bias add
    o_ref[0] = y.astype(o_ref.dtype)


def _project(x, wqt, b2d, ts, out_dtype):
    B, S, Ep = x.shape
    kernel = functools.partial(_linear_kernel, compute_dtype=wqt.dtype)
    return pl.pallas_call(
        kernel,
        out_shape=jax.ShapeDtypeStruct((B, S, Ep), out_dtype),
        grid_spec=pltpu.PrefetchScalarGridSpec(
            num_scalar_prefetch=0,
            grid=(B, S // ts),
            in_specs=[
                pl.BlockSpec((1, ts, Ep), lambda b, i: (b, i, 0)),
                # Constant block index -> weight / bias stay resident in VMEM.
                # TODO(synk): stream/K-tile the weight for very large E.
                pl.BlockSpec((Ep, Ep), lambda b, i: (0, 0)),
                pl.BlockSpec((1, Ep), lambda b, i: (0, 0)),
            ],
            out_specs=pl.BlockSpec((1, ts, Ep), lambda b, i: (b, i, 0)),
        ),
        compiler_params=pltpu.CompilerParams(
            dimension_semantics=("parallel", "parallel"),
            vmem_limit_bytes=_VMEM_LIMIT,
        ),
    )(x, wqt, b2d)


# -----------------------------------------------------------------------------
# 2) Flash-attention kernel over pre-projected (and pre-scaled) Q, K, V.
#    Grid (B, Sq_tiles, Sk_tiles); Sk axis is an "arbitrary" reduction with an
#    online-softmax accumulator in VMEM scratch.
# -----------------------------------------------------------------------------
def _flash_attn_kernel(*refs, mask_mode, compute_dtype):
    if mask_mode == "none":
        q_ref, k_ref, v_ref, o_ref, m_scr, l_scr, acc_scr = refs
        mask_ref = None
    else:
        q_ref, k_ref, v_ref, mask_ref, o_ref, m_scr, l_scr, acc_scr = refs

    ki = pl.program_id(2)

    @pl.when(ki == 0)
    def _init():
        m_scr[...] = jnp.full(m_scr.shape, -jnp.inf, jnp.float32)
        l_scr[...] = jnp.zeros(l_scr.shape, jnp.float32)
        acc_scr[...] = jnp.zeros(acc_scr.shape, jnp.float32)

    # Scores: contract last dims (no explicit K transpose). Q is pre-scaled bf16.
    s = lax.dot_general(q_ref[0], k_ref[0], (((1,), (1,)), ((), ())),
                        preferred_element_type=jnp.float32)          # (tq, tk)
    if mask_mode == "2d":
        s = jnp.where(mask_ref[...] == 1, _MASK_VALUE, s)
    elif mask_mode == "3d":
        s = jnp.where(mask_ref[0] == 1, _MASK_VALUE, s)

    # Online softmax update (stats stay f32).
    m_prev = m_scr[...]
    m_new = jnp.maximum(m_prev, jnp.max(s, axis=-1, keepdims=True))
    alpha = jnp.exp(m_prev - m_new)
    p = jnp.exp(s - m_new)
    l_scr[...] = alpha * l_scr[...] + jnp.sum(p, axis=-1, keepdims=True)
    acc_scr[...] = alpha * acc_scr[...] + jnp.dot(
        p.astype(compute_dtype), v_ref[0], preferred_element_type=jnp.float32)
    m_scr[...] = m_new

    @pl.when(ki == pl.num_programs(2) - 1)
    def _finalize():
        inv_l = pl.reciprocal(l_scr[...], approx=True)   # EUP slot, ~1e-3 rel err
        o_ref[0] = (acc_scr[...] * inv_l).astype(o_ref.dtype)


# -----------------------------------------------------------------------------
# Wrapper
# -----------------------------------------------------------------------------
def head_attention(xq, xk, xv, wq, bq, scale, attn_mask=None, *,
                   tq=None, tk=None, use_bf16=True):
    """xq:(B,Sq,E)  xk,xv:(B,Sk,E)  wq:(E,E) torch layout (out,in)  bq:(E,)."""
    B, Sq, E = xq.shape
    Sk = xk.shape[1]
    out_dtype = xq.dtype
    compute_dtype = jnp.bfloat16 if use_bf16 else jnp.float32

    # Pad the embed dim to a lane-dense multiple of 128.  Zero padding is exact:
    # padded channels project to exactly 0 and contribute 0 to QK^T and PV.
    Ep = ((E + 127) // 128) * 128
    if Ep != E:
        pe = Ep - E
        xq = jnp.pad(xq, ((0, 0), (0, 0), (0, pe)))
        xk = jnp.pad(xk, ((0, 0), (0, 0), (0, pe)))
        xv = jnp.pad(xv, ((0, 0), (0, 0), (0, pe)))
        wq = jnp.pad(wq, ((0, pe), (0, pe)))
        bq = jnp.pad(bq, ((0, pe),))

    # Pre-transpose once (kernel does x @ WqT); fold `scale` into the Q
    # projection; cast weight to the MXU compute dtype (bias stays f32).
    wqt = wq.T.astype(compute_dtype)
    wqt_q = (wq.T * jnp.float32(scale)).astype(compute_dtype)
    b2d = bq.reshape(1, Ep).astype(jnp.float32)
    b2d_q = b2d * jnp.float32(scale)

    # --- projections: each of xq / xk / xv projected exactly once ---
    ts_q = _pick_tile(Sq, (512, 256, 128))
    ts_k = _pick_tile(Sk, (512, 256, 128))
    q = _project(xq, wqt_q, b2d_q, ts_q, compute_dtype)   # pre-scaled Q
    k = _project(xk, wqt, b2d, ts_k, compute_dtype)
    v = _project(xv, wqt, b2d, ts_k, compute_dtype)

    # --- attention tiling ---
    if tq is None:
        tq = _pick_tile(Sq, (256, 128))
    if tk is None:
        tk = _pick_tile(Sk, (512, 256, 128))
    # v7x has 2 TensorCores sharded over the "parallel" axes: ensure B*nq >= 2.
    if B * (Sq // tq) < 2 and tq % 16 == 0:
        tq //= 2
    nq, nk = Sq // tq, Sk // tk

    in_specs = [
        pl.BlockSpec((1, tq, Ep), lambda b, qi, ki: (b, qi, 0)),   # Q (scaled)
        pl.BlockSpec((1, tk, Ep), lambda b, qi, ki: (b, ki, 0)),   # K
        pl.BlockSpec((1, tk, Ep), lambda b, qi, ki: (b, ki, 0)),   # V
    ]
    inputs = [q, k, v]

    mask_mode = "none"
    if attn_mask is not None:
        mask = jnp.asarray(attn_mask)
        if mask.ndim >= 3 and mask.shape[0] > 1:
            # Genuinely per-batch mask.
            mask_mode = "3d"
            inputs.append(jnp.broadcast_to(mask, (B, Sq, Sk)).astype(jnp.int8))
            in_specs.append(pl.BlockSpec((1, tq, tk), lambda b, qi, ki: (b, qi, ki)))
        else:
            # Batch-independent: ship ONE (Sq, Sk) int8 plane (B x less DMA).
            mask_mode = "2d"
            if mask.ndim >= 3:
                mask = mask.reshape(mask.shape[-2:])
            inputs.append(jnp.broadcast_to(mask, (Sq, Sk)).astype(jnp.int8))
            in_specs.append(pl.BlockSpec((tq, tk), lambda b, qi, ki: (qi, ki)))

    kernel = functools.partial(_flash_attn_kernel, mask_mode=mask_mode,
                               compute_dtype=compute_dtype)

    out = pl.pallas_call(
        kernel,
        out_shape=jax.ShapeDtypeStruct((B, Sq, Ep), out_dtype),
        grid_spec=pltpu.PrefetchScalarGridSpec(
            num_scalar_prefetch=0,
            grid=(B, nq, nk),
            in_specs=in_specs,
            out_specs=pl.BlockSpec((1, tq, Ep), lambda b, qi, ki: (b, qi, 0)),
            scratch_shapes=[
                pltpu.VMEM((tq, 1), jnp.float32),    # running max m
                pltpu.VMEM((tq, 1), jnp.float32),    # running denom l
                pltpu.VMEM((tq, Ep), jnp.float32),   # output accumulator
            ],
        ),
        compiler_params=pltpu.CompilerParams(
            dimension_semantics=("parallel", "parallel", "arbitrary"),
            vmem_limit_bytes=_VMEM_LIMIT,
        ),
    )(*inputs)

    if Ep != E:
        out = out[:, :, :E]
    return out


def reference(xq, xk, xv, wq, bq, scale, attn_mask=None):
    q = xq @ wq.T + bq
    k = xk @ wq.T + bq
    v = xv @ wq.T + bq
    s = jnp.einsum("bqe,bke->bqk", q, k) * scale
    if attn_mask is not None:
        s = jnp.where(attn_mask == 1, -jnp.inf, s)
    p = jax.nn.softmax(s, axis=-1)
    return jnp.einsum("bqk,bke->bqe", p, v)


if __name__ == "__main__":
    B, S, E = 2, 8, 32          # batch, seq, embed_dim
    laten_dim = 16
    scale = laten_dim ** (-0.5)

    key = jax.random.PRNGKey(0)
    kq_w, kq_b, kk_w, kk_b, kv_w, kv_b, kxq, kxk, kxv = jax.random.split(key, 9)

    bound = 1.0 / (E ** 0.5)
    wq = jax.random.uniform(kq_w, (E, E), jnp.float32, -bound, bound)
    bq = jax.random.uniform(kq_b, (E,), jnp.float32, -bound, bound)
    # linearK / linearV exist in __init__ but are unused in forward (kept for fidelity).
    wk = jax.random.uniform(kk_w, (E, E), jnp.float32, -bound, bound)  # noqa: F841
    bk = jax.random.uniform(kk_b, (E,), jnp.float32, -bound, bound)    # noqa: F841
    wv = jax.random.uniform(kv_w, (E, E), jnp.float32, -bound, bound)  # noqa: F841
    bv = jax.random.uniform(kv_b, (E,), jnp.float32, -bound, bound)    # noqa: F841

    xq = jax.random.normal(kxq, (B, S, E), jnp.float32)
    xk = jax.random.normal(kxk, (B, S, E), jnp.float32)
    xv = jax.random.normal(kxv, (B, S, E), jnp.float32)

    # --- unmasked, bf16 MXU path (default) ---
    out = jax.block_until_ready(head_attention(xq, xk, xv, wq, bq, scale))
    ref = reference(xq, xk, xv, wq, bq, scale, None)
    assert out.shape == (B, S, E)
    assert jnp.allclose(out, ref, atol=3e-2, rtol=3e-2), "unmasked (bf16) mismatch"

    # --- unmasked, f32 MXU path: tight-tolerance sanity check of the algorithm ---
    out32 = jax.block_until_ready(
        head_attention(xq, xk, xv, wq, bq, scale, use_bf16=False))
    assert jnp.allclose(out32, ref, atol=2e-3, rtol=2e-3), "unmasked (f32) mismatch"

    # --- batch-independent 2D mask (single (Sq,Sk) int8 plane DMA'd) ---
    causal = (jnp.arange(S)[None, :] > jnp.arange(S)[:, None]).astype(jnp.int32)
    out_m = jax.block_until_ready(
        head_attention(xq, xk, xv, wq, bq, scale, attn_mask=causal))
    ref_m = reference(xq, xk, xv, wq, bq, scale, causal)
    assert jnp.allclose(out_m, ref_m, atol=3e-2, rtol=3e-2), "2D-masked mismatch"

    # --- genuinely per-batch 3D mask (no fully-masked rows) ---
    anti = (jnp.arange(S)[None, :] < jnp.arange(S)[:, None]).astype(jnp.int32)
    mask3 = jnp.stack([causal, anti], axis=0)           # (B, S, S)
    out_m3 = jax.block_until_ready(
        head_attention(xq, xk, xv, wq, bq, scale, attn_mask=mask3))
    ref_m3 = reference(xq, xk, xv, wq, bq, scale, mask3)
    assert jnp.allclose(out_m3, ref_m3, atol=3e-2, rtol=3e-2), "3D-masked mismatch"

    print("KERNEL_OK")
</pallas_src>

<mosaic_0001>
module attributes {stable_mosaic.version = 11 : i64} {
  func.func @_linear_kernel(%arg0: i32, %arg1: i32, %arg2: memref<1x8x128xf32, #tpu.memory_space<vmem>>, %arg3: memref<128x128xbf16, #tpu.memory_space<vmem>>, %arg4: memref<1x128xf32, #tpu.memory_space<vmem>>, %arg5: memref<1x8x128xbf16, #tpu.memory_space<vmem>>) attributes {dimension_semantics = [#tpu.dimension_semantics<parallel>, #tpu.dimension_semantics<parallel>], iteration_bounds = array<i64: 2, 1>, scalar_prefetch = 0 : i64, scratch_operands = 0 : i64, tpu.core_type = #tpu.core_type<tc>, window_params = [{transform_indices = @transform_0, window_bounds = array<i64: 1, 8, 128>}, {pipeline_mode = #tpu.pipeline_mode<synchronous>, transform_indices = @transform_1, window_bounds = array<i64: 128, 128>}, {pipeline_mode = #tpu.pipeline_mode<synchronous>, transform_indices = @transform_2, window_bounds = array<i64: 1, 128>}, {transform_indices = @transform_3, window_bounds = array<i64: 1, 8, 128>}]} {
    %c0 = arith.constant 0 : index
    %c0_0 = arith.constant 0 : index
    %c0_1 = arith.constant 0 : index
    %0 = vector.load %arg2[%c0, %c0_0, %c0_1] : memref<1x8x128xf32, #tpu.memory_space<vmem>>, vector<1x8x128xf32>
    %1 = vector.shape_cast %0 : vector<1x8x128xf32> to vector<8x128xf32>
    %2 = arith.truncf %1 : vector<8x128xf32> to vector<8x128xbf16>
    %c0_2 = arith.constant 0 : index
    %c0_3 = arith.constant 0 : index
    %3 = vector.load %arg3[%c0_2, %c0_3] : memref<128x128xbf16, #tpu.memory_space<vmem>>, vector<128x128xbf16>
    %cst = arith.constant dense<0.000000e+00> : vector<8x128xf32>
    %4 = tpu.matmul %2, %3, %cst {dimension_numbers = #tpu.dot_dimension_numbers<[1], [0], [0], [1], [0, 0, 1, 1], [], []>} : vector<8x128xbf16>, vector<128x128xbf16>, vector<8x128xf32> -> vector<8x128xf32>
    %c0_4 = arith.constant 0 : index
    %c0_5 = arith.constant 0 : index
    %5 = vector.load %arg4[%c0_4, %c0_5] : memref<1x128xf32, #tpu.memory_space<vmem>>, vector<1x128xf32>
    %6 = vector.broadcast %5 : vector<1x128xf32> to vector<8x128xf32>
    %7 = arith.addf %4, %6 : vector<8x128xf32>
    %8 = arith.truncf %7 : vector<8x128xf32> to vector<8x128xbf16>
    %c0_6 = arith.constant 0 : index
    %c0_7 = arith.constant 0 : index
    %c0_8 = arith.constant 0 : index
    %9 = vector.load %arg5[%c0_6, %c0_7, %c0_8] : memref<1x8x128xbf16, #tpu.memory_space<vmem>>, vector<1x8x128xbf16>
    %10 = vector.shape_cast %9 : vector<1x8x128xbf16> to vector<8x128xbf16>
    %11 = vector.shape_cast %8 : vector<8x128xbf16> to vector<1x8x128xbf16>
    tpu.vector_store %arg5[%c0_6, %c0_7, %c0_8], %11 {strides = array<i32>} : memref<1x8x128xbf16, #tpu.memory_space<vmem>>, vector<1x8x128xbf16>,
    return
  }
  func.func @transform_0(%arg0: i32, %arg1: i32) -> (i32, i32, i32) {
    %c0_i32 = arith.constant 0 : i32
    %c0_i32_0 = arith.constant 0 : i32
    return %arg0, %arg1, %c0_i32 : i32, i32, i32
  }
  func.func @transform_1(%arg0: i32, %arg1: i32) -> (i32, i32) {
    %c0_i32 = arith.constant 0 : i32
    %c0_i32_0 = arith.constant 0 : i32
    %c0_i32_1 = arith.constant 0 : i32
    return %c0_i32, %c0_i32_0 : i32, i32
  }
  func.func @transform_2(%arg0: i32, %arg1: i32) -> (i32, i32) {
    %c0_i32 = arith.constant 0 : i32
    %c0_i32_0 = arith.constant 0 : i32
    %c0_i32_1 = arith.constant 0 : i32
    return %c0_i32, %c0_i32_0 : i32, i32
  }
  func.func @transform_3(%arg0: i32, %arg1: i32) -> (i32, i32, i32) {
    %c0_i32 = arith.constant 0 : i32
    %c0_i32_0 = arith.constant 0 : i32
    return %arg0, %arg1, %c0_i32 : i32, i32, i32
  }
}

</mosaic_0001>

<llo_original>
// kernel: tpu_custom_call.1
$region0: #{tpu_custom_call.1}
  #allocation0 [shape = 'u32[]', space=smem, size = 0x4, offset = 0x4, fixed_abs, tag = 'smem constant byte address 0x4 - core index']
  #allocation1 [shape = 'u32[144,128]{1,0:T(1,128)}', space=vmem, size = 0x12000, scoped, tag = 'internal scratch']
  %s0 = inlined_call_operand.hbm [shape: f32[2,8,128], index: 0, kind: input, shape index: {}]
  %s1 = inlined_call_operand.hbm [shape: bf16[128,128], index: 1, kind: input, shape index: {}]
  %s2 = inlined_call_operand.vmem [shape: f32[1,128], index: 2, kind: input, shape index: {}]
  %s3 = inlined_call_operand.hbm [shape: bf16[2,8,128], index: 3, kind: output, shape index: {}]
  %s4 = sld [smem:[#allocation0]]
  $region53: #{tpu_custom_call.1} parent=0
    _
  %s6 = ssub.s32 1, %s4
  %s7 = scalar_select 0, %s6, %s4
  $region1: #{tpu_custom_call.1} parent=0
    #allocation2 [shape = 'u8[8192]{0}', space=vmem, size = 0x2000, scoped, tag = 'input window, operand 0']
    #allocation3 [shape = 's32[2]{0}', space=sflag, size = 0x8, scoped, tag = 'scoped memory for tpu_custom_call.1']
    #allocation4 [shape = 's32[2]{0}', space=sflag, size = 0x8, scoped, tag = 'scoped memory for tpu_custom_call.1']
    #allocation5 [shape = 'u8[32768]{0}', space=vmem, size = 0x8000, scoped, tag = 'input window, operand 1, single buffered']
    #allocation6 [shape = 's32[1]{0}', space=sflag, size = 0x4, scoped, tag = 'scoped memory for tpu_custom_call.1']
    #allocation7 [shape = 'u8[4096]{0}', space=vmem, size = 0x1000, scoped, tag = 'output window, operand 0']
    %8 = vsyncpa [#allocation3], 0
    %s9 = scalar_lea.sflag [#allocation3], 1
    %10 = vsyncpa %s9, 0
    %11 = vsyncpa [#allocation6], 0
    %12 = vsyncpa [#allocation4], 0
    %s13 = scalar_lea.sflag [#allocation4], 1
    %14 = vsyncpa %s13, 0
    loop: start=0, step=1, limit=4
    $region2: #{tpu_custom_call.1} parent=1 // loop_pre_header
      _
    $region3: #{tpu_custom_call.1} parent=1 // loop_header
      %s16 = sphi 0, %s20
      %p17 = scmp.ge.s32.totalorder %s16, 4
      %s23 = sphi 0, %s35
      %s24 = sphi 0, %s31
      %s25 = sphi 0, %s23
      %s26 = sphi 0, %s24
      %s27 = sphi 0, %s25
      %s28 = sphi 0, %s26
      %s40 = sphi 0, %s42
      %s43 = sphi 0, %s40
      %s44 = sphi 0, %s43
      %s60 = sphi 0, %s44
      %s64 = sphi 0, %s64
      %s66 = sphi 0, %s64
      %s67 = sphi 0, %s66
      %s81 = sphi 0, %s67
      %s85 = sphi 0, %s85
      %s87 = sphi 0, %s85
      %s88 = sphi 0, %s87
      %s102 = sphi 0, %s88
      %s110 = sphi 0, %s112
      %s113 = sphi 0, %s110
      %s114 = sphi 0, %s113
      %s130 = sphi 0, %s114
    $region4: #{tpu_custom_call.1} parent=1 // loop_header_branch
      %19 = sbr.rel (%p17) target = $region8
    $region5: #{tpu_custom_call.1} parent=1 // loop_body
      %s21 = ssub.s32 %s16, 1
      %s22 = ssub.s32 %s16, 2
      %s29 = sadd.s32 1, %s24
      %p30 = scmp.ge.s32.totalorder %s29, 1
      %s31 = scalar_select %p30, 0, %s29
      %s32 = sadd.s32 1, %s23
      %s33 = scalar_select %p30, %s32, %s23
      %p34 = scmp.ge.s32.totalorder %s33, 2
      %s35 = scalar_select %p34, 0, %s33
      %s36 = ssub.s32 %s23, %s35
      %s37 = ssub.s32 %s24, %s31
      %s38 = sor.u32 %s36, %s37
      %p39 = scmp.eq.s32.totalorder %s38, 0
      %s41 = sadd.s32 %s40, 1
      %s42 = scalar_select %p39, %s40, %s41
      %p45 = pneg %p39
      %p46 = scmp.eq.s32.totalorder %s16, 1
      %p47 = por %p45, %p46
      %p48 = scmp.ne.s32.totalorder %s40, %s43
      %p49 = scmp.eq.s32.totalorder %s16, 0
      %p50 = por %p48, %p49
      %p51 = scmp.ne.s32.totalorder %s40, %s43
      %p52 = scmp.eq.s32.totalorder %s21, 1
      %p53 = por %p51, %p52
      %p54 = scmp.ne.s32.totalorder %s43, %s44
      %p55 = scmp.eq.s32.totalorder %s21, 0
      %p56 = por %p54, %p55
      %p57 = scmp.ne.s32.totalorder %s43, %s44
      %p58 = scmp.eq.s32.totalorder %s22, 1
      %p59 = por %p57, %p58
      %p61 = scmp.ne.s32.totalorder %s44, %s60
      %p62 = scmp.eq.s32.totalorder %s22, 0
      %p63 = por %p61, %p62
      %s65 = sadd.s32 %s64, 1
      %p68 = scmp.eq.s32.totalorder %s16, 1
      %p69 = scmp.ne.s32.totalorder %s64, %s66
      %p70 = scmp.eq.s32.totalorder %s16, 0
      %p71 = por %p69, %p70
      %p72 = scmp.ne.s32.totalorder %s64, %s66
      %p73 = scmp.eq.s32.totalorder %s21, 1
      %p74 = por %p72, %p73
      %p75 = scmp.ne.s32.totalorder %s66, %s67
      %p76 = scmp.eq.s32.totalorder %s21, 0
      %p77 = por %p75, %p76
      %p78 = scmp.ne.s32.totalorder %s66, %s67
      %p79 = scmp.eq.s32.totalorder %s22, 1
      %p80 = por %p78, %p79
      %p82 = scmp.ne.s32.totalorder %s67, %s81
      %p83 = scmp.eq.s32.totalorder %s22, 0
      %p84 = por %p82, %p83
      %s86 = sadd.s32 %s85, 1
      %p89 = scmp.eq.s32.totalorder %s16, 1
      %p90 = scmp.ne.s32.totalorder %s85, %s87
      %p91 = scmp.eq.s32.totalorder %s16, 0
      %p92 = por %p90, %p91
      %p93 = scmp.ne.s32.totalorder %s85, %s87
      %p94 = scmp.eq.s32.totalorder %s21, 1
      %p95 = por %p93, %p94
      %p96 = scmp.ne.s32.totalorder %s87, %s88
      %p97 = scmp.eq.s32.totalorder %s21, 0
      %p98 = por %p96, %p97
      %p99 = scmp.ne.s32.totalorder %s87, %s88
      %p100 = scmp.eq.s32.totalorder %s22, 1
      %p101 = por %p99, %p100
      %p103 = scmp.ne.s32.totalorder %s88, %s102
      %p104 = scmp.eq.s32.totalorder %s22, 0
      %p105 = por %p103, %p104
      %s106 = ssub.s32 %s23, %s35
      %s107 = ssub.s32 %s24, %s31
      %s108 = sor.u32 %s106, %s107
      %p109 = scmp.eq.s32.totalorder %s108, 0
      %s111 = sadd.s32 %s110, 1
      %s112 = scalar_select %p109, %s110, %s111
      %p115 = pneg %p109
      %p116 = scmp.eq.s32.totalorder %s16, 1
      %p117 = por %p115, %p116
      %p118 = scmp.ne.s32.totalorder %s110, %s113
      %p119 = scmp.eq.s32.totalorder %s16, 0
      %p120 = por %p118, %p119
      %p121 = scmp.ne.s32.totalorder %s110, %s113
      %p122 = scmp.eq.s32.totalorder %s21, 1
      %p123 = por %p121, %p122
      %p124 = scmp.ne.s32.totalorder %s113, %s114
      %p125 = scmp.eq.s32.totalorder %s21, 0
      %p126 = por %p124, %p125
      %p127 = scmp.ne.s32.totalorder %s113, %s114
      %p128 = scmp.eq.s32.totalorder %s22, 1
      %p129 = por %p127, %p128
      %p131 = scmp.ne.s32.totalorder %s114, %s130
      %p132 = scmp.eq.s32.totalorder %s22, 0
      %p133 = por %p131, %p132
      %p134 = scmp.le.s32.totalorder 1, %s16
      %p135 = scmp.lt.s32.totalorder %s16, 3
      %p136 = pnand %p134, %p135
      %p137 = pneg %p136
      // Predicated region
      $region9: #{tpu_custom_call.1} parent=5 // pred_check
        _
      $region10: #{tpu_custom_call.1} parent=5 // pred_check_branch
        %139 = sbr.rel (%p136) target = $region12
      $region11: #{tpu_custom_call.1} parent=5 // pred_region
        %s140 = ssub.s32 %s16, 1
        // Predicated region
        $region13: #{tpu_custom_call.1} parent=11 // pred_check
          %p141 = pneg %p77
        $region14: #{tpu_custom_call.1} parent=11 // pred_check_branch
          %143 = sbr.rel (%p141) target = $region16
        $region15: #{tpu_custom_call.1} parent=11 // pred_region
          %s145 = ssub.s32 1024, 1024
          %146 = vsyncadd [#allocation6], %s145
          %s147 = sshll.u32 [#allocation5], 4
          %s148 = int_to_ptr.vmem [resolvable:$true] %s147
          %153 = dma.hbm_to_vmem [thread:$0]  %s1, 1024, %s148, [#allocation6], 64, 64, 4
        $region16: #{tpu_custom_call.1} parent=11 // pred_fallthru
          _
        // Predicated region
        $region17: #{tpu_custom_call.1} parent=11 // pred_check
          %p154 = pneg %p98
        $region18: #{tpu_custom_call.1} parent=11 // pred_check_branch
          %156 = sbr.rel (%p154) target = $region20
        $region19: #{tpu_custom_call.1} parent=11 // pred_region
          _
        $region20: #{tpu_custom_call.1} parent=11 // pred_fallthru
          _
      $region12: #{tpu_custom_call.1} parent=5 // pred_fallthru
        _
      %p157 = scmp.lt.s32.totalorder %s16, 2
      // Predicated region
      $region21: #{tpu_custom_call.1} parent=5 // pred_check
        %p158 = pneg %p157
      $region22: #{tpu_custom_call.1} parent=5 // pred_check_branch
        %160 = sbr.rel (%p158) target = $region24
      $region23: #{tpu_custom_call.1} parent=5 // pred_region
        // Predicated region
        $region25: #{tpu_custom_call.1} parent=23 // pred_check
          %p161 = pneg %p50
        $region26: #{tpu_custom_call.1} parent=23 // pred_check_branch
          %163 = sbr.rel (%p161) target = $region28
        $region27: #{tpu_custom_call.1} parent=23 // pred_region
          %s164 = sand.u32 %s40, 1
          %s165 = scalar_lea.sflag [#allocation3], %s164
          %s166 = sand.u32 %s40, 1
          %s167 = smul.addr %s166, 8
          %s168 = scalar_lea.vmem [#allocation2], %s167
          %s170 = ssub.s32 128, 128
          %171 = vsyncadd %s165, %s170
          %s172 = sadd.s32 %s24, %s23
          %s173 = smul.addr %s172, 128
          %s174 = scalar_lea.hbm %s0, %s173
          %s176 = sshll.u32 %s168, 4
          %s177 = int_to_ptr.vmem [resolvable:$true] %s176
          %179 = dma.hbm_to_vmem [thread:$0]  %s174, 128, %s177, %s165
        $region28: #{tpu_custom_call.1} parent=23 // pred_fallthru
          _
      $region24: #{tpu_custom_call.1} parent=5 // pred_fallthru
        _
      %p180 = scmp.le.s32.totalorder 1, %s16
      %p181 = scmp.lt.s32.totalorder %s16, 3
      %p182 = pnand %p180, %p181
      %p183 = pneg %p182
      // Predicated region
      $region29: #{tpu_custom_call.1} parent=5 // pred_check
        _
      $region30: #{tpu_custom_call.1} parent=5 // pred_check_branch
        %185 = sbr.rel (%p182) target = $region32
      $region31: #{tpu_custom_call.1} parent=5 // pred_region
        %s186 = ssub.s32 %s16, 1
        %s187 = sand.u32 %s43, 1
        %s188 = scalar_lea.sflag [#allocation3], %s187
        %s189 = sand.u32 %s43, 1
        %s190 = smul.addr %s189, 8
        %s191 = scalar_lea.vmem [#allocation2], %s190
        // Predicated region
        $region33: #{tpu_custom_call.1} parent=31 // pred_check
          %p192 = pneg %p56
        $region34: #{tpu_custom_call.1} parent=31 // pred_check_branch
          %194 = sbr.rel (%p192) target = $region36
        $region35: #{tpu_custom_call.1} parent=31 // pred_region
          %195 = dma.done %s188, 128
        $region36: #{tpu_custom_call.1} parent=31 // pred_fallthru
          _
        // Predicated region
        $region37: #{tpu_custom_call.1} parent=31 // pred_check
          %p196 = pneg %p77
        $region38: #{tpu_custom_call.1} parent=31 // pred_check_branch
          %198 = sbr.rel (%p196) target = $region40
        $region39: #{tpu_custom_call.1} parent=31 // pred_region
          %199 = dma.done [#allocation6], 1024
        $region40: #{tpu_custom_call.1} parent=31 // pred_fallthru
          _
        %s200 = sand.u32 %s43, 1
        %s201 = scalar_lea.sflag [#allocation3], %s200
        %s202 = sand.u32 %s43, 1
        %s203 = smul.addr %s202, 8
        %s204 = scalar_lea.vmem [#allocation2], %s203
        %p205 = pneg %p56
        %p206 = pneg %p53
        %p207 = pneg %p77
        %p208 = pneg %p74
        %p209 = pneg %p98
        %p210 = pneg %p95
        %p211 = pneg %p126
        %p212 = pneg %p123
        %s213 = sand.u32 %s113, 1
        %s214 = scalar_lea.sflag [#allocation4], %s213
        %s215 = sand.u32 %s113, 1
        %s216 = smul.addr %s215, 4
        %s217 = scalar_lea.vmem [#allocation7], %s216
        %v219 = vld [vmem:[%s191] sm:$0xff]
        %v220 = vpack.c.bf16 %v219, %v219
        %v221 = vld [vmem:[#allocation5] sm:$0xf]
        %v222 = vld [vmem:[#allocation5 + $0x4] sm:$0xf]
        %v223 = vld [vmem:[#allocation5 + $0x8] sm:$0xf]
        %v224 = vld [vmem:[#allocation5 + $0xc] sm:$0xf]
        %v225 = vld [vmem:[#allocation5 + $0x10] sm:$0xf]
        %v226 = vld [vmem:[#allocation5 + $0x14] sm:$0xf]
        %v227 = vld [vmem:[#allocation5 + $0x18] sm:$0xf]
        %v228 = vld [vmem:[#allocation5 + $0x1c] sm:$0xf]
        %v229 = vld [vmem:[#allocation5 + $0x20] sm:$0xf]
        %v230 = vld [vmem:[#allocation5 + $0x24] sm:$0xf]
        %v231 = vld [vmem:[#allocation5 + $0x28] sm:$0xf]
        %v232 = vld [vmem:[#allocation5 + $0x2c] sm:$0xf]
        %v233 = vld [vmem:[#allocation5 + $0x30] sm:$0xf]
        %v234 = vld [vmem:[#allocation5 + $0x34] sm:$0xf]
        %v235 = vld [vmem:[#allocation5 + $0x38] sm:$0xf]
        %v236 = vld [vmem:[#allocation5 + $0x3c] sm:$0xf]
        %v237 = vld [vmem:[%s2] sm:$0x1]
        %v239 = vlaneseq
        %v240 = vshrl.u32 %v239, 7
        %v241 = vsub.s32 0, %v240
        %v242 = vrot.slane %v237, %v241
        %v260 = vunpack.c.l.b16 %v221
        %v261 = vunpack.c.l.b16 %v222
        %v262 = vunpack.c.l.b16 %v223
        %v263 = vunpack.c.l.b16 %v224
        %v264 = vunpack.c.l.b16 %v225
        %v265 = vunpack.c.l.b16 %v226
        %v266 = vunpack.c.l.b16 %v227
        %v267 = vunpack.c.l.b16 %v228
        %v268 = vunpack.c.l.b16 %v229
        %v269 = vunpack.c.l.b16 %v230
        %v270 = vunpack.c.l.b16 %v231
        %v271 = vunpack.c.l.b16 %v232
        %v272 = vunpack.c.l.b16 %v233
        %v273 = vunpack.c.l.b16 %v234
        %v274 = vunpack.c.l.b16 %v235
        %v275 = vunpack.c.l.b16 %v236
        %v276 = vpack.c.b16 %v261, %v260
        %v277 = vpack.c.b16 %v263, %v262
        %v278 = vpack.c.b16 %v265, %v264
        %v279 = vpack.c.b16 %v267, %v266
        %v280 = vpack.c.b16 %v269, %v268
        %v281 = vpack.c.b16 %v271, %v270
        %v282 = vpack.c.b16 %v273, %v272
        %v283 = vpack.c.b16 %v275, %v274
        %292 = vmatprep.subr.bf16.mxu0 0
        %293 = vmatpush1.bf16.msra.mxu0 %v276
        %294 = vmatprep.subr.bf16.mxu0 0
        %295 = vmatpush1.bf16.msra.mxu0 %v277
        %296 = vmatprep.subr.bf16.mxu0 0
        %297 = vmatpush1.bf16.msra.mxu0 %v278
        %298 = vmatprep.subr.bf16.mxu0 0
        %299 = vmatpush1.bf16.msra.mxu0 %v279
        %300 = vmatprep.subr.bf16.mxu0 0
        %301 = vmatpush1.bf16.msra.mxu0 %v280
        %302 = vmatprep.subr.bf16.mxu0 0
        %303 = vmatpush1.bf16.msra.mxu0 %v281
        %304 = vmatprep.subr.bf16.mxu0 0
        %305 = vmatpush1.bf16.msra.mxu0 %v282
        %306 = vmatprep.subr.bf16.mxu0 0
        %307 = vmatpush1.bf16.msra.mxu0 %v283
        %308 = vmatprep.subr.bf16.mxu0 0
        %309 = vmatpush1.bf16.msra.mxu0 0
        %310 = vmatprep.subr.bf16.mxu0 0
        %311 = vmatpush1.bf16.msra.mxu0 0
        %312 = vmatprep.subr.bf16.mxu0 0
        %313 = vmatpush1.bf16.msra.mxu0 0
        %314 = vmatprep.subr.bf16.mxu0 0
        %315 = vmatpush1.bf16.msra.mxu0 0
        %316 = vmatprep.subr.bf16.mxu0 0
        %317 = vmatpush1.bf16.msra.mxu0 0
        %318 = vmatprep.subr.bf16.mxu0 0
        %319 = vmatpush1.bf16.msra.mxu0 0
        %320 = vmatprep.subr.bf16.mxu0 0
        %321 = vmatpush1.bf16.msra.mxu0 0
        %322 = vmatprep.subr.bf16.mxu0 0
        %323 = vmatpush1.bf16.msra.mxu0 0
        %324 = vmatprep.mubr.bf16.mxu0 0
        %325 = vmatmul.mubr.bf16.gmra.mrb[0].mxu0 %v220
        %v326 = vpop.f32.mrb[0].mxu0
        %v327 = vadd.f32 %v242, %v326
        %v328 = vpop.f32.mrb[0].mxu0
        %v329 = vpop.f32.mrb[0].mxu0
        %v330 = vpop.f32.mrb[0].mxu0
        %331 = vdwg.mxu0
        %v332 = vpack.c.bf16 %v327, %v327
        %333 = vst [vmem:[%s217] sm:$0xf] %v332
        %s334 = sand.u32 %s113, 1
        %s335 = scalar_lea.sflag [#allocation4], %s334
        %s336 = sand.u32 %s113, 1
        %s337 = smul.addr %s336, 4
        %s338 = scalar_lea.vmem [#allocation7], %s337
        // Predicated region
        $region41: #{tpu_custom_call.1} parent=31 // pred_check
          %p339 = pneg %p123
        $region42: #{tpu_custom_call.1} parent=31 // pred_check_branch
          %341 = sbr.rel (%p339) target = $region44
        $region43: #{tpu_custom_call.1} parent=31 // pred_region
          %s343 = ssub.s32 64, 64
          %344 = vsyncadd %s335, %s343
          %s345 = sadd.s32 %s26, %s25
          %s346 = smul.addr %s345, 64
          %s347 = scalar_lea.hbm %s3, %s346
          %s349 = sshll.u32 %s338, 4
          %s350 = int_to_ptr.vmem [resolvable:$true] %s349
          %352 = dma.vmem_to_hbm [thread:$0]  %s350, 64, %s347, %s335
        $region44: #{tpu_custom_call.1} parent=31 // pred_fallthru
          _
      $region32: #{tpu_custom_call.1} parent=5 // pred_fallthru
        _
      %p353 = scmp.le.s32.totalorder 2, %s16
      // Predicated region
      $region45: #{tpu_custom_call.1} parent=5 // pred_check
        %p354 = pneg %p353
      $region46: #{tpu_custom_call.1} parent=5 // pred_check_branch
        %356 = sbr.rel (%p354) target = $region48
      $region47: #{tpu_custom_call.1} parent=5 // pred_region
        %s357 = ssub.s32 %s16, 2
        // Predicated region
        $region49: #{tpu_custom_call.1} parent=47 // pred_check
          %p358 = pneg %p129
        $region50: #{tpu_custom_call.1} parent=47 // pred_check_branch
          %360 = sbr.rel (%p358) target = $region52
        $region51: #{tpu_custom_call.1} parent=47 // pred_region
          %s361 = sand.u32 %s114, 1
          %s362 = scalar_lea.sflag [#allocation4], %s361
          %s363 = sand.u32 %s114, 1
          %s364 = smul.addr %s363, 4
          %s365 = scalar_lea.vmem [#allocation7], %s364
          %366 = dma.done %s362, 64
        $region52: #{tpu_custom_call.1} parent=47 // pred_fallthru
          _
      $region48: #{tpu_custom_call.1} parent=5 // pred_fallthru
        _
    $region6: #{tpu_custom_call.1} parent=1 // loop_footer
      %s20 = sadd.s32 1, %s16
    $region7: #{tpu_custom_call.1} parent=1 // loop_footer_branch
      %15 = sbr.rel target = $region3
    $region8: #{tpu_custom_call.1} parent=1 // loop_exit
      _
    %367 = vsyncpa [#allocation3], 1
    %s368 = scalar_lea.sflag [#allocation3], 1
    %369 = vsyncpa %s368, 1
    %370 = vsyncpa [#allocation6], 1
    %371 = vsyncpa [#allocation4], 1
    %s372 = scalar_lea.sflag [#allocation4], 1
    %373 = vsyncpa %s372, 1

</llo_original>
